<compile_context>
chip_gen: v7x
topology: tpu7x:2x2x1
jax: 0.10.0
libtpu: 0.0.40
codegen_flags: <defaults>
</compile_context>

<pallas_src>
import jax
import jax.numpy as jnp
from jax import lax
from jax.experimental import pallas as pl
from jax.experimental.pallas import tpu as pltpu


def _cdiv(a, b):
    return -(-a // b)


def _make_signal2spd_kernel(true_t, t_pad, c_pad):
    need_t_mask = t_pad != true_t

    def kernel(x_ref, o_ref):
        # x_ref block: (B_blk, C_pad, T_pad); o_ref block: (B_blk, C_pad, C_pad)
        x = x_ref[...].astype(jnp.float32)

        # per-channel mean over the TRUE time length (padded columns are zero,
        # so the sum is exact; dividing by true_t matches torch .mean(-1)).
        mean = jnp.sum(x, axis=-1, keepdims=True) / jnp.float32(true_t)
        xc = x - mean
        if need_t_mask:
            # padded time columns would otherwise hold -mean; zero them so they
            # contribute nothing to the covariance or the trace.
            col = lax.broadcasted_iota(jnp.int32, x.shape, dimension=2)
            xc = jnp.where(col < true_t, xc, jnp.float32(0.0))

        # un-normalized covariance: contract LAST dims of both operands on the
        # MXU with f32 accumulation — no transposed (C, T) tile materialized.
        cov_raw = lax.dot_general(
            xc, xc,
            dimension_numbers=(((2,), (2,)), ((0,), (0,))),
            preferred_element_type=jnp.float32)          # (B_blk, C_pad, C_pad)

        # identity mask (iota compare, no gather); reused for trace + 1e-5*I.
        row = lax.broadcasted_iota(jnp.int32, (c_pad, c_pad), 0)
        col2 = lax.broadcasted_iota(jnp.int32, (c_pad, c_pad), 1)
        eye = (row == col2).astype(jnp.float32)          # (C_pad, C_pad)

        # trace from the diagonal of cov_raw: a C^2-sized reduce (T >> C), and
        # xc's live range ends at the matmul (less VMEM temp pressure).
        tra_raw = jnp.sum(cov_raw * eye[None], axis=(1, 2), keepdims=True)
        # clamp only guards the all-zero padded batches (real traces are >> 0).
        inv_tra = pl.reciprocal(jnp.maximum(tra_raw, jnp.float32(1e-30)),
                                approx=False)

        o_ref[...] = (cov_raw * inv_tra + jnp.float32(1e-5) * eye[None]).astype(
            o_ref.dtype)

    return kernel


def _vmem_limit_bytes():
    """Generation-aware VMEM limit: ~3/4 of physical, capped at 96 MiB."""
    try:
        cap = int(pltpu.get_tpu_info().vmem_capacity_bytes)
    except Exception:  # interpreter / unknown chip: assume v7x-sized VMEM
        cap = 64 * 1024 * 1024
    return min((cap * 3) // 4, 96 * 1024 * 1024)


def signal2spd(x):
    """x: (B, 1, C, T) or (B, C, T). Returns (B, C, C) float32 SPD matrices."""
    if x.ndim == 4:
        # mimic torch .squeeze() for the (B, 1, C, T) layout (B > 1 case);
        # note torch would also drop the batch dim when B == 1 — we keep it.
        x = jnp.squeeze(x, axis=1)
    B, C, T = x.shape
    in_itemsize = jnp.dtype(x.dtype).itemsize

    # --- pad channels to a sublane multiple (8) and time to a lane multiple
    # --- (128).  Padded channels are all-zero (no contribution); padded time
    # --- columns are masked in-kernel after mean subtraction.
    C_pad = _cdiv(C, 8) * 8
    T_pad = _cdiv(T, 128) * 128
    if C_pad != C or T_pad != T:
        x = jnp.pad(x, ((0, 0), (0, C_pad - C), (0, T_pad - T)))

    # --- choose batch block size -------------------------------------------
    vmem_limit = _vmem_limit_bytes()
    # real per-batch working set: double-buffered input + f32 centered temp +
    # cov_raw + double-buffered f32 output.
    per_batch_bytes = ((2 * in_itemsize + 4) * C_pad * T_pad
                       + 3 * 4 * C_pad * C_pad)
    budget = (vmem_limit * 6) // 10          # leave headroom for compiler scratch
    max_bblk_vmem = max(1, budget // per_batch_bytes)

    # keep >= 2 grid steps (>= 4 for larger B) so the pipeline has work to
    # overlap and the "parallel" axis shards across v7x's two TensorCores.
    target_steps = 4 if B >= 8 else (2 if B >= 2 else 1)
    b_blk = max(1, min(max_bblk_vmem, _cdiv(B, target_steps)))
    num_steps = _cdiv(B, b_blk)
    if num_steps > 1 and num_steps % 2:      # even split across 2 cores
        num_steps += 1
    B_pad = num_steps * b_blk
    if B_pad != B:
        x = jnp.pad(x, ((0, B_pad - B), (0, 0), (0, 0)))
    grid = (num_steps,)
    # TODO(synk): for extremely long signals (per-batch block >> budget) add a
    # T-reduction ("arbitrary", last) grid axis with a (B_blk, C, C) f32 VMEM
    # accumulator + two-pass mean instead of growing the input block.

    cost = pl.CostEstimate(
        flops=2 * B_pad * C_pad * C_pad * T_pad,
        transcendentals=0,
        bytes_accessed=in_itemsize * B_pad * C_pad * T_pad
                       + 4 * B_pad * C_pad * C_pad,
    )

    kernel = _make_signal2spd_kernel(T, T_pad, C_pad)

    out = pl.pallas_call(
        kernel,
        out_shape=jax.ShapeDtypeStruct((B_pad, C_pad, C_pad), jnp.float32),
        grid_spec=pltpu.PrefetchScalarGridSpec(
            num_scalar_prefetch=0,
            grid=grid,
            in_specs=[pl.BlockSpec((b_blk, C_pad, T_pad), lambda b: (b, 0, 0))],
            out_specs=pl.BlockSpec((b_blk, C_pad, C_pad), lambda b: (b, 0, 0)),
        ),
        compiler_params=pltpu.CompilerParams(
            dimension_semantics=("parallel",),
            vmem_limit_bytes=vmem_limit,
        ),
        cost_estimate=cost,
    )(x)

    return out[:B, :C, :C]


def _reference(x):
    # pure-JAX reference mirroring the PyTorch forward
    if x.ndim == 4:
        x = jnp.squeeze(x, axis=1)
    mean = jnp.mean(x, axis=-1, keepdims=True)
    xc = x - mean
    cov = jnp.einsum("bct,bdt->bcd", xc, xc) / (x.shape[-1] - 1)
    tra = jnp.trace(cov, axis1=-2, axis2=-1).reshape(-1, 1, 1)
    cov = cov / tra
    eye = jnp.eye(cov.shape[-1], dtype=cov.dtype)[None]
    return cov + 1e-5 * eye


if __name__ == "__main__":
    # case 1: aligned shapes (C mult of 8, T mult of 128), 2-step grid
    B, C, T = 2, 8, 128
    x1 = jax.random.normal(jax.random.PRNGKey(0), (B, 1, C, T),
                           dtype=jnp.float32)
    out1 = jax.block_until_ready(signal2spd(x1))
    ref1 = _reference(x1)
    assert out1.shape == (B, C, C)
    assert jnp.allclose(out1, ref1, atol=1e-5, rtol=1e-4), "mismatch (case 1)"

    # case 2: EEG-like shapes — C not a multiple of 8, T not a multiple of 128,
    # B odd → exercises C/T padding with time-masking and batch padding.
    B2, C2, T2 = 3, 22, 96
    x2 = jax.random.normal(jax.random.PRNGKey(1), (B2, 1, C2, T2),
                           dtype=jnp.float32)
    out2 = jax.block_until_ready(signal2spd(x2))
    ref2 = _reference(x2)
    assert out2.shape == (B2, C2, C2)
    assert jnp.allclose(out2, ref2, atol=1e-5, rtol=1e-4), "mismatch (case 2)"

    print("KERNEL_OK")
</pallas_src>

<mosaic_0001>
module attributes {stable_mosaic.version = 11 : i64} {
  func.func @kernel(%arg0: i32, %arg1: memref<1x8x128xf32, #tpu.memory_space<vmem>>, %arg2: memref<1x8x8xf32, #tpu.memory_space<vmem>>) attributes {dimension_semantics = [#tpu.dimension_semantics<parallel>], iteration_bounds = array<i64: 2>, scalar_prefetch = 0 : i64, scratch_operands = 0 : i64, tpu.core_type = #tpu.core_type<tc>, window_params = [{transform_indices = @transform_0, window_bounds = array<i64: 1, 8, 128>}, {transform_indices = @transform_1, window_bounds = array<i64: 1, 8, 8>}]} {
    %c0 = arith.constant 0 : index
    %c0_0 = arith.constant 0 : index
    %c0_1 = arith.constant 0 : index
    %0 = vector.load %arg1[%c0, %c0_0, %c0_1] : memref<1x8x128xf32, #tpu.memory_space<vmem>>, vector<1x8x128xf32>
    %cst = arith.constant dense<0.000000e+00> : vector<1x8xf32>
    %1 = vector.multi_reduction <add>, %0, %cst [2] : vector<1x8x128xf32> to vector<1x8xf32>
    %2 = vector.shape_cast %1 : vector<1x8xf32> to vector<1x8x1xf32>
    %cst_2 = arith.constant 1.280000e+02 : f32
    %3 = vector.broadcast %cst_2 : f32 to vector<1x8x1xf32>
    %4 = arith.divf %2, %3 : vector<1x8x1xf32>
    %5 = vector.broadcast %4 : vector<1x8x1xf32> to vector<1x8x128xf32>
    %6 = arith.subf %0, %5 : vector<1x8x128xf32>
    %cst_3 = arith.constant dense<0.000000e+00> : vector<1x8x8xf32>
    %7 = tpu.matmul %6, %6, %cst_3 {dimension_numbers = #tpu.dot_dimension_numbers<[2], [2], [1], [1], [0, 0, 0, 1, 1, 1], [0], [0]>} : vector<1x8x128xf32>, vector<1x8x128xf32>, vector<1x8x8xf32> -> vector<1x8x8xf32>
    %8 = tpu.iota {dimensions = array<i32: 0>} : vector<8x8xi32>
    %9 = tpu.iota {dimensions = array<i32: 1>} : vector<8x8xi32>
    %10 = arith.cmpi eq, %8, %9 : vector<8x8xi32>
    %11 = arith.extui %10 : vector<8x8xi1> to vector<8x8xi32>
    %12 = arith.sitofp %11 : vector<8x8xi32> to vector<8x8xf32>
    %13 = vector.shape_cast %12 : vector<8x8xf32> to vector<1x8x8xf32>
    %14 = arith.mulf %7, %13 : vector<1x8x8xf32>
    %cst_4 = arith.constant dense<0.000000e+00> : vector<1xf32>
    %15 = vector.multi_reduction <add>, %14, %cst_4 [1, 2] : vector<1x8x8xf32> to vector<1xf32>
    %16 = vector.shape_cast %15 : vector<1xf32> to vector<1x1x1xf32>
    %cst_5 = arith.constant 1.000000e-30 : f32
    %17 = vector.broadcast %cst_5 : f32 to vector<1x1x1xf32>
    %18 = arith.maximumf %16, %17 : vector<1x1x1xf32>
    %19 = tpu.reciprocal %18 : vector<1x1x1xf32> -> vector<1x1x1xf32>
    %20 = vector.broadcast %19 : vector<1x1x1xf32> to vector<1x8x8xf32>
    %21 = arith.mulf %7, %20 : vector<1x8x8xf32>
    %22 = vector.shape_cast %12 : vector<8x8xf32> to vector<1x8x8xf32>
    %cst_6 = arith.constant 9.99999974E-6 : f32
    %23 = vector.broadcast %cst_6 : f32 to vector<1x8x8xf32>
    %24 = arith.mulf %23, %22 : vector<1x8x8xf32>
    %25 = arith.addf %21, %24 : vector<1x8x8xf32>
    %c0_7 = arith.constant 0 : index
    %c0_8 = arith.constant 0 : index
    %c0_9 = arith.constant 0 : index
    %26 = vector.load %arg2[%c0_7, %c0_8, %c0_9] : memref<1x8x8xf32, #tpu.memory_space<vmem>>, vector<1x8x8xf32>
    tpu.vector_store %arg2[%c0_7, %c0_8, %c0_9], %25 {strides = array<i32>} : memref<1x8x8xf32, #tpu.memory_space<vmem>>, vector<1x8x8xf32>,
    return
  }
  func.func @transform_0(%arg0: i32) -> (i32, i32, i32) {
    %c0_i32 = arith.constant 0 : i32
    %c0_i32_0 = arith.constant 0 : i32
    %c0_i32_1 = arith.constant 0 : i32
    return %arg0, %c0_i32, %c0_i32_0 : i32, i32, i32
  }
  func.func @transform_1(%arg0: i32) -> (i32, i32, i32) {
    %c0_i32 = arith.constant 0 : i32
    %c0_i32_0 = arith.constant 0 : i32
    %c0_i32_1 = arith.constant 0 : i32
    return %arg0, %c0_i32, %c0_i32_0 : i32, i32, i32
  }
}

</mosaic_0001>

<llo_original>
// kernel: tpu_custom_call.1
$region0: #{tpu_custom_call.1}
  #allocation0 [shape = 'u32[]', space=smem, size = 0x4, offset = 0x4, fixed_abs, tag = 'smem constant byte address 0x4 - core index']
  #allocation1 [shape = 'u32[144,128]{1,0:T(1,128)}', space=vmem, size = 0x12000, scoped, tag = 'internal scratch']
  %s0 = inlined_call_operand.hbm [shape: f32[2,8,128], index: 0, kind: input, shape index: {}]
  %s1 = inlined_call_operand.hbm [shape: f32[2,8,8], index: 1, kind: output, shape index: {}]
  %s2 = sld [smem:[#allocation0]]
  $region41: #{tpu_custom_call.1} parent=0
    _
  %s4 = ssub.s32 1, %s2
  %s5 = scalar_select 0, %s4, %s2
  $region1: #{tpu_custom_call.1} parent=0
    #allocation2 [shape = 'u8[8192]{0}', space=vmem, size = 0x2000, scoped, tag = 'input window, operand 0']
    #allocation3 [shape = 's32[2]{0}', space=sflag, size = 0x8, scoped, tag = 'scoped memory for tpu_custom_call.1']
    #allocation4 [shape = 's32[2]{0}', space=sflag, size = 0x8, scoped, tag = 'scoped memory for tpu_custom_call.1']
    #allocation5 [shape = 'u8[8192]{0}', space=vmem, size = 0x2000, scoped, tag = 'output window, operand 0']
    %6 = vsyncpa [#allocation3], 0
    %s7 = scalar_lea.sflag [#allocation3], 1
    %8 = vsyncpa %s7, 0
    %9 = vsyncpa [#allocation4], 0
    %s10 = scalar_lea.sflag [#allocation4], 1
    %11 = vsyncpa %s10, 0
    loop: start=0, step=1, limit=4
    $region2: #{tpu_custom_call.1} parent=1 // loop_pre_header
      _
    $region3: #{tpu_custom_call.1} parent=1 // loop_header
      %s13 = sphi 0, %s17
      %p14 = scmp.ge.s32.totalorder %s13, 4
      %s23 = sphi 0, %s25
      %s26 = sphi 0, %s23
      %s27 = sphi 0, %s26
      %s43 = sphi 0, %s27
      %s49 = sphi 0, %s51
      %s52 = sphi 0, %s49
      %s53 = sphi 0, %s52
      %s69 = sphi 0, %s53
    $region4: #{tpu_custom_call.1} parent=1 // loop_header_branch
      %16 = sbr.rel (%p14) target = $region8
    $region5: #{tpu_custom_call.1} parent=1 // loop_body
      %s18 = ssub.s32 %s13, 1
      %s19 = ssub.s32 %s13, 2
      %s20 = sadd.s32 %s13, 1
      %s21 = ssub.s32 %s13, %s20
      %p22 = scmp.eq.s32.totalorder %s21, 0
      %s24 = sadd.s32 %s23, 1
      %s25 = scalar_select %p22, %s23, %s24
      %p28 = pneg %p22
      %p29 = scmp.eq.s32.totalorder %s13, 1
      %p30 = por %p28, %p29
      %p31 = scmp.ne.s32.totalorder %s23, %s26
      %p32 = scmp.eq.s32.totalorder %s13, 0
      %p33 = por %p31, %p32
      %p34 = scmp.ne.s32.totalorder %s23, %s26
      %p35 = scmp.eq.s32.totalorder %s18, 1
      %p36 = por %p34, %p35
      %p37 = scmp.ne.s32.totalorder %s26, %s27
      %p38 = scmp.eq.s32.totalorder %s18, 0
      %p39 = por %p37, %p38
      %p40 = scmp.ne.s32.totalorder %s26, %s27
      %p41 = scmp.eq.s32.totalorder %s19, 1
      %p42 = por %p40, %p41
      %p44 = scmp.ne.s32.totalorder %s27, %s43
      %p45 = scmp.eq.s32.totalorder %s19, 0
      %p46 = por %p44, %p45
      %s47 = ssub.s32 %s13, %s20
      %p48 = scmp.eq.s32.totalorder %s47, 0
      %s50 = sadd.s32 %s49, 1
      %s51 = scalar_select %p48, %s49, %s50
      %p54 = pneg %p48
      %p55 = scmp.eq.s32.totalorder %s13, 1
      %p56 = por %p54, %p55
      %p57 = scmp.ne.s32.totalorder %s49, %s52
      %p58 = scmp.eq.s32.totalorder %s13, 0
      %p59 = por %p57, %p58
      %p60 = scmp.ne.s32.totalorder %s49, %s52
      %p61 = scmp.eq.s32.totalorder %s18, 1
      %p62 = por %p60, %p61
      %p63 = scmp.ne.s32.totalorder %s52, %s53
      %p64 = scmp.eq.s32.totalorder %s18, 0
      %p65 = por %p63, %p64
      %p66 = scmp.ne.s32.totalorder %s52, %s53
      %p67 = scmp.eq.s32.totalorder %s19, 1
      %p68 = por %p66, %p67
      %p70 = scmp.ne.s32.totalorder %s53, %s69
      %p71 = scmp.eq.s32.totalorder %s19, 0
      %p72 = por %p70, %p71
      %p73 = scmp.le.s32.totalorder 1, %s13
      %p74 = scmp.lt.s32.totalorder %s13, 3
      %p75 = pnand %p73, %p74
      %p76 = pneg %p75
      // Predicated region
      $region9: #{tpu_custom_call.1} parent=5 // pred_check
        _
      $region10: #{tpu_custom_call.1} parent=5 // pred_check_branch
        %78 = sbr.rel (%p75) target = $region12
      $region11: #{tpu_custom_call.1} parent=5 // pred_region
        %s79 = ssub.s32 %s13, 1
      $region12: #{tpu_custom_call.1} parent=5 // pred_fallthru
        _
      %p80 = scmp.lt.s32.totalorder %s13, 2
      // Predicated region
      $region13: #{tpu_custom_call.1} parent=5 // pred_check
        %p81 = pneg %p80
      $region14: #{tpu_custom_call.1} parent=5 // pred_check_branch
        %83 = sbr.rel (%p81) target = $region16
      $region15: #{tpu_custom_call.1} parent=5 // pred_region
        // Predicated region
        $region17: #{tpu_custom_call.1} parent=15 // pred_check
          %p84 = pneg %p33
        $region18: #{tpu_custom_call.1} parent=15 // pred_check_branch
          %86 = sbr.rel (%p84) target = $region20
        $region19: #{tpu_custom_call.1} parent=15 // pred_region
          %s87 = sand.u32 %s23, 1
          %s88 = scalar_lea.sflag [#allocation3], %s87
          %s89 = sand.u32 %s23, 1
          %s90 = smul.addr %s89, 8
          %s91 = scalar_lea.vmem [#allocation2], %s90
          %s93 = ssub.s32 128, 128
          %94 = vsyncadd %s88, %s93
          %s95 = smul.addr %s13, 128
          %s96 = scalar_lea.hbm %s0, %s95
          %s98 = sshll.u32 %s91, 4
          %s99 = int_to_ptr.vmem [resolvable:$true] %s98
          %101 = dma.hbm_to_vmem [thread:$0]  %s96, 128, %s99, %s88
        $region20: #{tpu_custom_call.1} parent=15 // pred_fallthru
          _
      $region16: #{tpu_custom_call.1} parent=5 // pred_fallthru
        _
      %p102 = scmp.le.s32.totalorder 1, %s13
      %p103 = scmp.lt.s32.totalorder %s13, 3
      %p104 = pnand %p102, %p103
      %p105 = pneg %p104
      // Predicated region
      $region21: #{tpu_custom_call.1} parent=5 // pred_check
        _
      $region22: #{tpu_custom_call.1} parent=5 // pred_check_branch
        %107 = sbr.rel (%p104) target = $region24
      $region23: #{tpu_custom_call.1} parent=5 // pred_region
        %s108 = ssub.s32 %s13, 1
        %s109 = sand.u32 %s26, 1
        %s110 = scalar_lea.sflag [#allocation3], %s109
        %s111 = sand.u32 %s26, 1
        %s112 = smul.addr %s111, 8
        %s113 = scalar_lea.vmem [#allocation2], %s112
        // Predicated region
        $region25: #{tpu_custom_call.1} parent=23 // pred_check
          %p114 = pneg %p39
        $region26: #{tpu_custom_call.1} parent=23 // pred_check_branch
          %116 = sbr.rel (%p114) target = $region28
        $region27: #{tpu_custom_call.1} parent=23 // pred_region
          %117 = dma.done %s110, 128
        $region28: #{tpu_custom_call.1} parent=23 // pred_fallthru
          _
        %s118 = sand.u32 %s26, 1
        %s119 = scalar_lea.sflag [#allocation3], %s118
        %s120 = sand.u32 %s26, 1
        %s121 = smul.addr %s120, 8
        %s122 = scalar_lea.vmem [#allocation2], %s121
        %p123 = pneg %p39
        %p124 = pneg %p36
        %p125 = pneg %p65
        %p126 = pneg %p62
        %s127 = sand.u32 %s52, 1
        %s128 = scalar_lea.sflag [#allocation4], %s127
        %s129 = sand.u32 %s52, 1
        %s130 = smul.addr %s129, 8
        %s131 = scalar_lea.vmem [#allocation5], %s130
        %v132 = vld [vmem:[%s113] sm:$0xff]
        %133 = vadd.xlane.f32.xlu0 %v132
        %v134 = vpop.xlane.xlu0 %133
        %v135 = vrcp.pop 128.0
        %v136 = vmul.f32 %v134, %v135
        %v137 = vsub.f32 %v132, %v136
        %138 = vmatprep.subr.mxu0 0.0
        %139 = vmatpush1.xpose.msra.mxu0 %v137
        %140 = vmatprep.subr.mxu0 0.0
        %141 = vmatpush1.xpose.msra.mxu0 0.0
        %142 = vmatprep.subr.mxu0 0.0
        %143 = vmatpush1.xpose.msra.mxu0 0.0
        %144 = vmatprep.subr.mxu0 0.0
        %145 = vmatpush1.xpose.msra.mxu0 0.0
        %146 = vmatprep.subr.mxu0 0.0
        %147 = vmatpush1.xpose.msra.mxu0 0.0
        %148 = vmatprep.subr.mxu0 0.0
        %149 = vmatpush1.xpose.msra.mxu0 0.0
        %150 = vmatprep.subr.mxu0 0.0
        %151 = vmatpush1.xpose.msra.mxu0 0.0
        %152 = vmatprep.subr.mxu0 0.0
        %153 = vmatpush1.xpose.msra.mxu0 0.0
        %154 = vmatprep.subr.mxu0 0.0
        %155 = vmatpush1.xpose.msra.mxu0 0.0
        %156 = vmatprep.subr.mxu0 0.0
        %157 = vmatpush1.xpose.msra.mxu0 0.0
        %158 = vmatprep.subr.mxu0 0.0
        %159 = vmatpush1.xpose.msra.mxu0 0.0
        %160 = vmatprep.subr.mxu0 0.0
        %161 = vmatpush1.xpose.msra.mxu0 0.0
        %162 = vmatprep.subr.mxu0 0.0
        %163 = vmatpush1.xpose.msra.mxu0 0.0
        %164 = vmatprep.subr.mxu0 0.0
        %165 = vmatpush1.xpose.msra.mxu0 0.0
        %166 = vmatprep.subr.mxu0 0.0
        %167 = vmatpush1.xpose.msra.mxu0 0.0
        %168 = vmatprep.subr.mxu0 0.0
        %169 = vmatpush1.xpose.msra.mxu0 0.0
        %170 = vmatprep.subr.mxu0 0.0
        %171 = vmatpush1.xpose.msra.mxu0 0.0
        %172 = vmatprep.subr.mxu0 0.0
        %173 = vmatpush1.xpose.msra.mxu0 0.0
        %174 = vmatprep.subr.mxu0 0.0
        %175 = vmatpush1.xpose.msra.mxu0 0.0
        %176 = vmatprep.subr.mxu0 0.0
        %177 = vmatpush1.xpose.msra.mxu0 0.0
        %178 = vmatprep.subr.mxu0 0.0
        %179 = vmatpush1.xpose.msra.mxu0 0.0
        %180 = vmatprep.subr.mxu0 0.0
        %181 = vmatpush1.xpose.msra.mxu0 0.0
        %182 = vmatprep.subr.mxu0 0.0
        %183 = vmatpush1.xpose.msra.mxu0 0.0
        %184 = vmatprep.subr.mxu0 0.0
        %185 = vmatpush1.xpose.msra.mxu0 0.0
        %186 = vmatprep.subr.mxu0 0.0
        %187 = vmatpush1.xpose.msra.mxu0 0.0
        %188 = vmatprep.subr.mxu0 0.0
        %189 = vmatpush1.xpose.msra.mxu0 0.0
        %190 = vmatprep.subr.mxu0 0.0
        %191 = vmatpush1.xpose.msra.mxu0 0.0
        %192 = vmatprep.subr.mxu0 0.0
        %193 = vmatpush1.xpose.msra.mxu0 0.0
        %194 = vmatprep.subr.mxu0 0.0
        %195 = vmatpush1.xpose.msra.mxu0 0.0
        %196 = vmatprep.subr.mxu0 0.0
        %197 = vmatpush1.xpose.msra.mxu0 0.0
        %198 = vmatprep.subr.mxu0 0.0
        %199 = vmatpush1.xpose.msra.mxu0 0.0
        %200 = vmatprep.subr.mxu0 0.0
        %201 = vmatpush1.xpose.msra.mxu0 0.0
        %202 = vmatprep.mubr.f32.mxu0 0.0
        %203 = vmatmul.mubr.f32.gmra.mrb[0].mxu0 %v137
        %v204 = vpop.f32.mrb[0].mxu0
        %v205 = vadd.f32 0.0, %v204
        %v206 = vpop.f32.mrb[0].mxu0
        %207 = vdwg.mxu0
        %v208 = vlaneseq
        %v209 = vshrl.u32 %v208, 7
        %v210 = vlaneseq
        %v211 = vand.u32 %v210, 127
        %vm212 = vcmp.eq.s32.totalorder %v209, %v211
        %v213 = vsel %vm212, 1, 0
        %v214 = vcvt.s32.f32 %v213
        %v215 = vmul.f32 %v205, %v214
        %vm216 = vcmask 64512
        %v217 = vsel %vm216, %v215, 0.0
        %218 = vadd.xlane.f32.xlu0 %v217
        %v219 = vpop.xlane.xlu0 %218
        %v220 = vrot.slane %v219, 4
        %v221 = vadd.f32 %v219, %v220
        %v222 = vrot.slane %v221, 2
        %v223 = vadd.f32 %v221, %v222
        %v224 = vrot.slane %v223, 1
        %v225 = vadd.f32 %v223, %v224
        %v226 = vmax.f32 %v225, 1e-30
        %v227 = vrcp.pop %v226
        %v228 = vmul.f32 %v205, %v227
        %v229 = vmul.f32 %v214, 1e-05
        %v230 = vadd.f32 %v228, %v229
        %231 = vst.msk [vmem:[%s131] sm:$0xff] %vm216, %v230
        %s232 = sand.u32 %s52, 1
        %s233 = scalar_lea.sflag [#allocation4], %s232
        %s234 = sand.u32 %s52, 1
        %s235 = smul.addr %s234, 8
        %s236 = scalar_lea.vmem [#allocation5], %s235
        // Predicated region
        $region29: #{tpu_custom_call.1} parent=23 // pred_check
          %p237 = pneg %p62
        $region30: #{tpu_custom_call.1} parent=23 // pred_check_branch
          %239 = sbr.rel (%p237) target = $region32
        $region31: #{tpu_custom_call.1} parent=23 // pred_region
          %s241 = ssub.s32 128, 128
          %242 = vsyncadd %s233, %s241
          %s243 = smul.addr %s18, 128
          %s244 = scalar_lea.hbm %s1, %s243
          %s246 = sshll.u32 %s236, 4
          %s247 = int_to_ptr.vmem [resolvable:$true] %s246
          %249 = dma.vmem_to_hbm [thread:$0]  %s247, 128, %s244, %s233
        $region32: #{tpu_custom_call.1} parent=23 // pred_fallthru
          _
      $region24: #{tpu_custom_call.1} parent=5 // pred_fallthru
        _
      %p250 = scmp.le.s32.totalorder 2, %s13
      // Predicated region
      $region33: #{tpu_custom_call.1} parent=5 // pred_check
        %p251 = pneg %p250
      $region34: #{tpu_custom_call.1} parent=5 // pred_check_branch
        %253 = sbr.rel (%p251) target = $region36
      $region35: #{tpu_custom_call.1} parent=5 // pred_region
        %s254 = ssub.s32 %s13, 2
        // Predicated region
        $region37: #{tpu_custom_call.1} parent=35 // pred_check
          %p255 = pneg %p68
        $region38: #{tpu_custom_call.1} parent=35 // pred_check_branch
          %257 = sbr.rel (%p255) target = $region40
        $region39: #{tpu_custom_call.1} parent=35 // pred_region
          %s258 = sand.u32 %s53, 1
          %s259 = scalar_lea.sflag [#allocation4], %s258
          %s260 = sand.u32 %s53, 1
          %s261 = smul.addr %s260, 8
          %s262 = scalar_lea.vmem [#allocation5], %s261
          %263 = dma.done %s259, 128
        $region40: #{tpu_custom_call.1} parent=35 // pred_fallthru
          _
      $region36: #{tpu_custom_call.1} parent=5 // pred_fallthru
        _
    $region6: #{tpu_custom_call.1} parent=1 // loop_footer
      %s17 = sadd.s32 1, %s13
    $region7: #{tpu_custom_call.1} parent=1 // loop_footer_branch
      %12 = sbr.rel target = $region3
    $region8: #{tpu_custom_call.1} parent=1 // loop_exit
      _
    %264 = vsyncpa [#allocation3], 1
    %s265 = scalar_lea.sflag [#allocation3], 1
    %266 = vsyncpa %s265, 1
    %267 = vsyncpa [#allocation4], 1
    %s268 = scalar_lea.sflag [#allocation4], 1
    %269 = vsyncpa %s268, 1

</llo_original>
